<compile_context>
chip_gen: v6e
topology: v6e:2x2x1
jax: 0.10.0
libtpu: 0.0.40
codegen_flags: <defaults>
</compile_context>

<pallas_src>
import functools

import jax
import jax.numpy as jnp
from jax.experimental import pallas as pl
from jax.experimental.pallas import tpu as pltpu


NEG_SLOPE = 0.2      # nn.LeakyReLU(0.2)
LANE = 128           # pad every *output* feature dim to a multiple of the lane width
ROW_ALIGN = 16       # keep row tiles 16-aligned (bf16 sublane packing)
_SLACK = 2 << 20     # VMEM slack for compiler-internal scratch


def _leaky_relu(v):
    # mul + max instead of compare + select: fewer VALU ops per epilogue.
    return jnp.maximum(v, NEG_SLOPE * v)


def _round_up(v, m):
    return (v + m - 1) // m * m


def _pad2(a, rows, cols):
    r, c = a.shape
    return jnp.pad(a, ((0, rows - r), (0, cols - c)))


def _device_kind():
    try:
        return jax.devices()[0].device_kind.lower()
    except Exception:
        return ""


def _default_bf16_epilogue():
    k = _device_kind()
    # v6e / v7x have bf16 VPU lanes; keep the f32 epilogue elsewhere (v5e has none).
    return ("v6" in k) or ("v7" in k)


def _vmem_capacity_bytes():
    k = _device_kind()
    if "v7" in k:
        return 64 << 20           # v7x: 64 MiB per TensorCore
    if ("v5" in k) or ("v6" in k):
        return 128 << 20          # v5e / v6e: 128 MiB
    return 64 << 20               # unknown / older: stay conservative


def ae_encoder_kernel(x_ref, w1_ref, b1_ref, w2_ref, b2_ref, w3_ref, b3_ref,
                      wz_ref, bz_ref, out_ref, *, epi_dtype):
    """Four fused Linear layers on one row tile.

    MXU: bf16 operands, f32 accumulation.  Epilogue (bias + LeakyReLU) runs in
    `epi_dtype` (bf16 on v6e/v7x, f32 on v5e).  z_layer has no activation.
    """
    def layer(a, w_ref, b_ref, act):
        acc = jnp.dot(a, w_ref[...], preferred_element_type=jnp.float32)
        v = acc.astype(epi_dtype) + b_ref[...]
        return _leaky_relu(v) if act else v

    a0 = x_ref[...].astype(jnp.bfloat16)       # bf16 cast in VMEM (no HBM pre-pass)
    z = layer(a0, w1_ref, b1_ref, act=True)
    z = layer(z.astype(jnp.bfloat16), w2_ref, b2_ref, act=True)
    z = layer(z.astype(jnp.bfloat16), w3_ref, b3_ref, act=True)
    z = layer(z.astype(jnp.bfloat16), wz_ref, bz_ref, act=False)
    out_ref[...] = z.astype(out_ref.dtype)


@functools.partial(jax.jit,
                   static_argnames=("tile_rows", "out_dtype", "bf16_epilogue"))
def ae_encoder_forward(x, params, *, tile_rows=None, out_dtype=jnp.bfloat16,
                       bf16_epilogue=None):
    """params = (w1, b1, w2, b2, w3, b3, wz, bz); weights are (in, out),
    biases are (1, out).  Returns (n, n_z) in `out_dtype` (default bf16 —
    pass out_dtype=jnp.float32 / bf16_epilogue=False if full f32 is needed)."""
    w1, b1, w2, b2, w3, b3, wz, bz = params
    n, n_input = x.shape
    n_z = wz.shape[1]

    if bf16_epilogue is None:
        bf16_epilogue = _default_bf16_epilogue()
    epi_dtype = jnp.bfloat16 if bf16_epilogue else jnp.float32

    # Lane-padded *output* feature dims (zero padding keeps the math exact:
    # padded columns stay exactly zero through bias + LeakyReLU, and the
    # matching zero rows of the next weight contribute nothing).
    d1 = _round_up(w1.shape[1], LANE)
    d2 = _round_up(w2.shape[1], LANE)
    d3 = _round_up(w3.shape[1], LANE)
    dz = _round_up(n_z, LANE)

    out_isz = jnp.dtype(out_dtype).itemsize
    epi_isz = jnp.dtype(epi_dtype).itemsize

    # --- VMEM footprint model -------------------------------------------------
    # resident: double-buffered bf16 weights + biases (constant index maps)
    weight_bytes = 2 * 2 * (n_input * d1 + d1 * d2 + d2 * d3 + d3 * dz)
    bias_bytes = 2 * epi_isz * (d1 + d2 + d3 + dz)

    def _tile_bytes(t):
        # streamed: double-buffered f32 x tile + double-buffered output tile
        stream = 2 * t * n_input * 4 + 2 * t * dz * out_isz
        # in-kernel live intermediates: f32 accumulator + bf16 copy per layer
        inter = t * (d1 + d2 + d3) * (4 + 2) + t * dz * 4
        return stream + inter

    cap = _vmem_capacity_bytes()
    usable = (cap * 5) // 8            # headroom (v7x: ~40 MiB of 64 MiB)

    # --- Row-tile selection ----------------------------------------------------
    n_al = max(ROW_ALIGN, _round_up(n, ROW_ALIGN))
    if tile_rows is None:
        # Big tiles amortize the ~0.35 us per-grid-step overhead; keep ~8 grid
        # steps for pipelining / megacore sharding, hard cap 4096 rows.
        tm = min(4096, _round_up(max(1, -(-n // 8)), ROW_ALIGN))
    else:
        tm = _round_up(max(1, min(int(tile_rows), n_al)), ROW_ALIGN)
    # v7x megacore: make sure there are at least 2 row tiles when possible.
    if n > ROW_ALIGN and -(-n // tm) < 2:
        tm = _round_up(-(-n // 2), ROW_ALIGN)
    # Clamp so streamed tiles + intermediates + weights fit the VMEM budget.
    while tm > ROW_ALIGN and (weight_bytes + bias_bytes + _tile_bytes(tm)
                              + _SLACK) > usable:
        tm = max(ROW_ALIGN, _round_up(tm // 2, ROW_ALIGN))

    grid = -(-n // tm)   # cdiv; the overhanging part of the last block is masked

    vmem_need = weight_bytes + bias_bytes + _tile_bytes(tm) + _SLACK
    vmem_limit = int(min(max(vmem_need, 16 << 20), (cap * 3) // 4))

    # --- Pad + cast the tiny resident operands (a few hundred KiB at most) -----
    w1_p = _pad2(w1, n_input, d1).astype(jnp.bfloat16)   # K stays un-padded
    w2_p = _pad2(w2, d1, d2).astype(jnp.bfloat16)
    w3_p = _pad2(w3, d2, d3).astype(jnp.bfloat16)
    wz_p = _pad2(wz, d3, dz).astype(jnp.bfloat16)
    b1_p = _pad2(b1, 1, d1).astype(epi_dtype)
    b2_p = _pad2(b2, 1, d2).astype(epi_dtype)
    b3_p = _pad2(b3, 1, d3).astype(epi_dtype)
    bz_p = _pad2(bz, 1, dz).astype(epi_dtype)

    def resident(arr):
        # Constant index map: DMA'd once, stays resident in VMEM.
        return pl.BlockSpec(arr.shape, lambda i: (0, 0))

    kernel = functools.partial(ae_encoder_kernel, epi_dtype=epi_dtype)

    out = pl.pallas_call(
        kernel,
        out_shape=jax.ShapeDtypeStruct((n, dz), out_dtype),
        grid_spec=pltpu.PrefetchScalarGridSpec(
            num_scalar_prefetch=0,
            grid=(grid,),
            in_specs=[
                # Streamed raw-f32 x tile; last dim equals the full feature dim
                # so no lane padding (and no pre-pass) is needed on the input.
                pl.BlockSpec((tm, n_input), lambda i: (i, 0)),
                resident(w1_p), resident(b1_p),
                resident(w2_p), resident(b2_p),
                resident(w3_p), resident(b3_p),
                resident(wz_p), resident(bz_p),
            ],
            out_specs=pl.BlockSpec((tm, dz), lambda i: (i, 0)),   # lane-dense
        ),
        compiler_params=pltpu.CompilerParams(
            dimension_semantics=("parallel",),    # shard row tiles across TCs
            vmem_limit_bytes=vmem_limit,
        ),
    )(x, w1_p, b1_p, w2_p, b2_p, w3_p, b3_p, wz_p, bz_p)

    # Column slice only (rows are exact).  Consumers that can read the
    # lane-padded slab directly should skip this slice to save a copy.
    return out[:, :n_z]


def init_params(key, n_input, ae_n_enc_1, ae_n_enc_2, ae_n_enc_3, n_z):
    """Deterministic synthetic init (Kaiming-uniform-ish), weights (in, out)."""
    dims = [(n_input, ae_n_enc_1), (ae_n_enc_1, ae_n_enc_2),
            (ae_n_enc_2, ae_n_enc_3), (ae_n_enc_3, n_z)]
    params = []
    for (fan_in, fan_out) in dims:
        key, kw, kb = jax.random.split(key, 3)
        bound = 1.0 / jnp.sqrt(fan_in)
        w = jax.random.uniform(kw, (fan_in, fan_out), jnp.float32, -bound, bound)
        b = jax.random.uniform(kb, (1, fan_out), jnp.float32, -bound, bound)
        params.extend([w, b])
    return tuple(params)


def reference_forward(x, params):
    """Plain-JAX pure-f32 reference matching the PyTorch semantics."""
    w1, b1, w2, b2, w3, b3, wz, bz = params
    z = _leaky_relu(x @ w1 + b1)
    z = _leaky_relu(z @ w2 + b2)
    z = _leaky_relu(z @ w3 + b3)
    return z @ wz + bz


def emulated_forward(x, params, epi_dtype, out_dtype=jnp.bfloat16):
    """Plain-JAX emulation of the kernel's exact mixed-precision math."""
    w1, b1, w2, b2, w3, b3, wz, bz = params

    def layer(a, w, b, act):
        acc = jnp.dot(a.astype(jnp.bfloat16), w.astype(jnp.bfloat16),
                      preferred_element_type=jnp.float32)
        v = acc.astype(epi_dtype) + b.astype(epi_dtype)
        return _leaky_relu(v) if act else v

    z = layer(x, w1, b1, True)
    z = layer(z, w2, b2, True)
    z = layer(z, w3, b3, True)
    z = layer(z, wz, bz, False)
    return z.astype(out_dtype)


if __name__ == "__main__":
    # Small shapes consistent with the module.  batch deliberately not a
    # multiple of the row tile so the masked partial-block path and the
    # multi-step (pipelined / megacore-shardable) grid are both exercised.
    batch = 300
    n_input, ae_n_enc_1, ae_n_enc_2, ae_n_enc_3, n_z = 32, 64, 64, 128, 16

    key = jax.random.PRNGKey(0)
    key, kx = jax.random.split(key)
    x = jax.random.normal(kx, (batch, n_input), jnp.float32)
    params = init_params(key, n_input, ae_n_enc_1, ae_n_enc_2, ae_n_enc_3, n_z)

    bf16_epi = _default_bf16_epilogue()
    z_ae = ae_encoder_forward(x, params, bf16_epilogue=bf16_epi)
    z_ae = jax.block_until_ready(z_ae)
    assert z_ae.shape == (batch, n_z)

    # Tight check: plain-JAX emulation of the kernel's mixed-precision math
    # (only MXU-vs-XLA accumulation order + rounding boundaries differ).
    epi_dtype = jnp.bfloat16 if bf16_epi else jnp.float32
    z_emu = emulated_forward(x, params, epi_dtype)
    err_emu = float(jnp.max(jnp.abs(z_ae.astype(jnp.float32)
                                    - z_emu.astype(jnp.float32))))
    assert err_emu < 2e-2, f"emulation mismatch: {err_emu}"

    # Loose sanity check vs. the pure-f32 reference (bf16 operands / epilogue /
    # output are a deliberate accuracy-for-bandwidth tradeoff; use
    # out_dtype=jnp.float32, bf16_epilogue=False if f32 output is contractual).
    z_ref = reference_forward(x, params)
    err_ref = float(jnp.max(jnp.abs(z_ae.astype(jnp.float32) - z_ref)))
    assert err_ref < 7.5e-2, f"f32 reference mismatch: {err_ref}"

    print("KERNEL_OK")
</pallas_src>

<mosaic_0001>
module attributes {stable_mosaic.version = 11 : i64} {
  func.func @ae_encoder_kernel(%arg0: i32, %arg1: memref<48x32xf32, #tpu.memory_space<vmem>>, %arg2: memref<32x128xbf16, #tpu.memory_space<vmem>>, %arg3: memref<1x128xf32, #tpu.memory_space<vmem>>, %arg4: memref<128x128xbf16, #tpu.memory_space<vmem>>, %arg5: memref<1x128xf32, #tpu.memory_space<vmem>>, %arg6: memref<128x128xbf16, #tpu.memory_space<vmem>>, %arg7: memref<1x128xf32, #tpu.memory_space<vmem>>, %arg8: memref<128x128xbf16, #tpu.memory_space<vmem>>, %arg9: memref<1x128xf32, #tpu.memory_space<vmem>>, %arg10: memref<48x128xbf16, #tpu.memory_space<vmem>>) attributes {dimension_semantics = [#tpu.dimension_semantics<parallel>], iteration_bounds = array<i64: 7>, scalar_prefetch = 0 : i64, scratch_operands = 0 : i64, tpu.core_type = #tpu.core_type<tc>, window_params = [{transform_indices = @transform_0, window_bounds = array<i64: 48, 32>}, {pipeline_mode = #tpu.pipeline_mode<synchronous>, transform_indices = @transform_1, window_bounds = array<i64: 32, 128>}, {pipeline_mode = #tpu.pipeline_mode<synchronous>, transform_indices = @transform_2, window_bounds = array<i64: 1, 128>}, {pipeline_mode = #tpu.pipeline_mode<synchronous>, transform_indices = @transform_3, window_bounds = array<i64: 128, 128>}, {pipeline_mode = #tpu.pipeline_mode<synchronous>, transform_indices = @transform_4, window_bounds = array<i64: 1, 128>}, {pipeline_mode = #tpu.pipeline_mode<synchronous>, transform_indices = @transform_5, window_bounds = array<i64: 128, 128>}, {pipeline_mode = #tpu.pipeline_mode<synchronous>, transform_indices = @transform_6, window_bounds = array<i64: 1, 128>}, {pipeline_mode = #tpu.pipeline_mode<synchronous>, transform_indices = @transform_7, window_bounds = array<i64: 128, 128>}, {pipeline_mode = #tpu.pipeline_mode<synchronous>, transform_indices = @transform_8, window_bounds = array<i64: 1, 128>}, {transform_indices = @transform_9, window_bounds = array<i64: 48, 128>}]} {
    %c0 = arith.constant 0 : index
    %c0_0 = arith.constant 0 : index
    %0 = vector.load %arg1[%c0, %c0_0] : memref<48x32xf32, #tpu.memory_space<vmem>>, vector<48x32xf32>
    %1 = arith.truncf %0 : vector<48x32xf32> to vector<48x32xbf16>
    %c0_1 = arith.constant 0 : index
    %c0_2 = arith.constant 0 : index
    %2 = vector.load %arg2[%c0_1, %c0_2] : memref<32x128xbf16, #tpu.memory_space<vmem>>, vector<32x128xbf16>
    %cst = arith.constant dense<0.000000e+00> : vector<48x128xf32>
    %3 = tpu.matmul %1, %2, %cst {dimension_numbers = #tpu.dot_dimension_numbers<[1], [0], [0], [1], [0, 0, 1, 1], [], []>} : vector<48x32xbf16>, vector<32x128xbf16>, vector<48x128xf32> -> vector<48x128xf32>
    %c0_3 = arith.constant 0 : index
    %c0_4 = arith.constant 0 : index
    %4 = vector.load %arg3[%c0_3, %c0_4] : memref<1x128xf32, #tpu.memory_space<vmem>>, vector<1x128xf32>
    %5 = vector.broadcast %4 : vector<1x128xf32> to vector<48x128xf32>
    %6 = arith.addf %3, %5 : vector<48x128xf32>
    %cst_5 = arith.constant 2.000000e-01 : f32
    %7 = vector.broadcast %cst_5 : f32 to vector<48x128xf32>
    %8 = arith.mulf %7, %6 : vector<48x128xf32>
    %9 = arith.maximumf %6, %8 : vector<48x128xf32>
    %10 = arith.truncf %9 : vector<48x128xf32> to vector<48x128xbf16>
    %c0_6 = arith.constant 0 : index
    %c0_7 = arith.constant 0 : index
    %11 = vector.load %arg4[%c0_6, %c0_7] : memref<128x128xbf16, #tpu.memory_space<vmem>>, vector<128x128xbf16>
    %cst_8 = arith.constant dense<0.000000e+00> : vector<48x128xf32>
    %12 = tpu.matmul %10, %11, %cst_8 {dimension_numbers = #tpu.dot_dimension_numbers<[1], [0], [0], [1], [0, 0, 1, 1], [], []>} : vector<48x128xbf16>, vector<128x128xbf16>, vector<48x128xf32> -> vector<48x128xf32>
    %c0_9 = arith.constant 0 : index
    %c0_10 = arith.constant 0 : index
    %13 = vector.load %arg5[%c0_9, %c0_10] : memref<1x128xf32, #tpu.memory_space<vmem>>, vector<1x128xf32>
    %14 = vector.broadcast %13 : vector<1x128xf32> to vector<48x128xf32>
    %15 = arith.addf %12, %14 : vector<48x128xf32>
    %cst_11 = arith.constant 2.000000e-01 : f32
    %16 = vector.broadcast %cst_11 : f32 to vector<48x128xf32>
    %17 = arith.mulf %16, %15 : vector<48x128xf32>
    %18 = arith.maximumf %15, %17 : vector<48x128xf32>
    %19 = arith.truncf %18 : vector<48x128xf32> to vector<48x128xbf16>
    %c0_12 = arith.constant 0 : index
    %c0_13 = arith.constant 0 : index
    %20 = vector.load %arg6[%c0_12, %c0_13] : memref<128x128xbf16, #tpu.memory_space<vmem>>, vector<128x128xbf16>
    %cst_14 = arith.constant dense<0.000000e+00> : vector<48x128xf32>
    %21 = tpu.matmul %19, %20, %cst_14 {dimension_numbers = #tpu.dot_dimension_numbers<[1], [0], [0], [1], [0, 0, 1, 1], [], []>} : vector<48x128xbf16>, vector<128x128xbf16>, vector<48x128xf32> -> vector<48x128xf32>
    %c0_15 = arith.constant 0 : index
    %c0_16 = arith.constant 0 : index
    %22 = vector.load %arg7[%c0_15, %c0_16] : memref<1x128xf32, #tpu.memory_space<vmem>>, vector<1x128xf32>
    %23 = vector.broadcast %22 : vector<1x128xf32> to vector<48x128xf32>
    %24 = arith.addf %21, %23 : vector<48x128xf32>
    %cst_17 = arith.constant 2.000000e-01 : f32
    %25 = vector.broadcast %cst_17 : f32 to vector<48x128xf32>
    %26 = arith.mulf %25, %24 : vector<48x128xf32>
    %27 = arith.maximumf %24, %26 : vector<48x128xf32>
    %28 = arith.truncf %27 : vector<48x128xf32> to vector<48x128xbf16>
    %c0_18 = arith.constant 0 : index
    %c0_19 = arith.constant 0 : index
    %29 = vector.load %arg8[%c0_18, %c0_19] : memref<128x128xbf16, #tpu.memory_space<vmem>>, vector<128x128xbf16>
    %cst_20 = arith.constant dense<0.000000e+00> : vector<48x128xf32>
    %30 = tpu.matmul %28, %29, %cst_20 {dimension_numbers = #tpu.dot_dimension_numbers<[1], [0], [0], [1], [0, 0, 1, 1], [], []>} : vector<48x128xbf16>, vector<128x128xbf16>, vector<48x128xf32> -> vector<48x128xf32>
    %c0_21 = arith.constant 0 : index
    %c0_22 = arith.constant 0 : index
    %31 = vector.load %arg9[%c0_21, %c0_22] : memref<1x128xf32, #tpu.memory_space<vmem>>, vector<1x128xf32>
    %32 = vector.broadcast %31 : vector<1x128xf32> to vector<48x128xf32>
    %33 = arith.addf %30, %32 : vector<48x128xf32>
    %34 = arith.truncf %33 : vector<48x128xf32> to vector<48x128xbf16>
    %c0_23 = arith.constant 0 : index
    %c0_24 = arith.constant 0 : index
    %35 = vector.load %arg10[%c0_23, %c0_24] : memref<48x128xbf16, #tpu.memory_space<vmem>>, vector<48x128xbf16>
    tpu.vector_store %arg10[%c0_23, %c0_24], %34 {strides = array<i32>} : memref<48x128xbf16, #tpu.memory_space<vmem>>, vector<48x128xbf16>,
    return
  }
  func.func @transform_0(%arg0: i32) -> (i32, i32) {
    %c0_i32 = arith.constant 0 : i32
    %c0_i32_0 = arith.constant 0 : i32
    return %arg0, %c0_i32 : i32, i32
  }
  func.func @transform_1(%arg0: i32) -> (i32, i32) {
    %c0_i32 = arith.constant 0 : i32
    %c0_i32_0 = arith.constant 0 : i32
    %c0_i32_1 = arith.constant 0 : i32
    return %c0_i32, %c0_i32_0 : i32, i32
  }
  func.func @transform_2(%arg0: i32) -> (i32, i32) {
    %c0_i32 = arith.constant 0 : i32
    %c0_i32_0 = arith.constant 0 : i32
    %c0_i32_1 = arith.constant 0 : i32
    return %c0_i32, %c0_i32_0 : i32, i32
  }
  func.func @transform_3(%arg0: i32) -> (i32, i32) {
    %c0_i32 = arith.constant 0 : i32
    %c0_i32_0 = arith.constant 0 : i32
    %c0_i32_1 = arith.constant 0 : i32
    return %c0_i32, %c0_i32_0 : i32, i32
  }
  func.func @transform_4(%arg0: i32) -> (i32, i32) {
    %c0_i32 = arith.constant 0 : i32
    %c0_i32_0 = arith.constant 0 : i32
    %c0_i32_1 = arith.constant 0 : i32
    return %c0_i32, %c0_i32_0 : i32, i32
  }
  func.func @transform_5(%arg0: i32) -> (i32, i32) {
    %c0_i32 = arith.constant 0 : i32
    %c0_i32_0 = arith.constant 0 : i32
    %c0_i32_1 = arith.constant 0 : i32
    return %c0_i32, %c0_i32_0 : i32, i32
  }
  func.func @transform_6(%arg0: i32) -> (i32, i32) {
    %c0_i32 = arith.constant 0 : i32
    %c0_i32_0 = arith.constant 0 : i32
    %c0_i32_1 = arith.constant 0 : i32
    return %c0_i32, %c0_i32_0 : i32, i32
  }
  func.func @transform_7(%arg0: i32) -> (i32, i32) {
    %c0_i32 = arith.constant 0 : i32
    %c0_i32_0 = arith.constant 0 : i32
    %c0_i32_1 = arith.constant 0 : i32
    return %c0_i32, %c0_i32_0 : i32, i32
  }
  func.func @transform_8(%arg0: i32) -> (i32, i32) {
    %c0_i32 = arith.constant 0 : i32
    %c0_i32_0 = arith.constant 0 : i32
    %c0_i32_1 = arith.constant 0 : i32
    return %c0_i32, %c0_i32_0 : i32, i32
  }
  func.func @transform_9(%arg0: i32) -> (i32, i32) {
    %c0_i32 = arith.constant 0 : i32
    %c0_i32_0 = arith.constant 0 : i32
    return %arg0, %c0_i32 : i32, i32
  }
}

</mosaic_0001>

<llo_original>
// kernel: ae_encoder_forward.1
$region0: #{ae_encoder_forward.1}
  #allocation0 [shape = 'u32[]', space=smem, size = 0x4, offset = 0x4, fixed_abs, tag = 'smem constant byte address 0x4 - core index']
  #allocation1 [shape = 'u32[144,128]{1,0:T(1,128)}', space=vmem, size = 0x12000, scoped, tag = 'internal scratch']
  %s0 = inlined_call_operand.vmem [shape: f32[300,32], index: 0, kind: input, shape index: {}]
  %s1 = inlined_call_operand.vmem [shape: bf16[32,128], index: 1, kind: input, shape index: {}]
  %s2 = inlined_call_operand.vmem [shape: f32[1,128], index: 2, kind: input, shape index: {}]
  %s3 = inlined_call_operand.vmem [shape: bf16[128,128], index: 3, kind: input, shape index: {}]
  %s4 = inlined_call_operand.vmem [shape: f32[1,128], index: 4, kind: input, shape index: {}]
  %s5 = inlined_call_operand.vmem [shape: bf16[128,128], index: 5, kind: input, shape index: {}]
  %s6 = inlined_call_operand.vmem [shape: f32[1,128], index: 6, kind: input, shape index: {}]
  %s7 = inlined_call_operand.vmem [shape: bf16[128,128], index: 7, kind: input, shape index: {}]
  %s8 = inlined_call_operand.vmem [shape: f32[1,128], index: 8, kind: input, shape index: {}]
  %s9 = inlined_call_operand.vmem [shape: bf16[300,128], index: 9, kind: output, shape index: {}]
  %s10 = sld [smem:[#allocation0]]
  $region113: #{ae_encoder_forward.1} parent=0
    _
  %s12 = ssub.s32 1, %s10
  %s13 = scalar_select 0, %s12, %s10
  $region1: #{ae_encoder_forward.1} parent=0
    #allocation2 [shape = 'u8[24576]{0}', space=vmem, size = 0x6000, scoped, tag = 'output window, operand 0']
    loop: start=0, step=1, limit=9
    $region2: #{ae_encoder_forward.1} parent=1 // loop_pre_header
      _
    $region3: #{ae_encoder_forward.1} parent=1 // loop_header
      %s15 = sphi 0, %s19
      %p16 = scmp.ge.s32.totalorder %s15, 9
      %s25 = sphi 0, %s27
      %s28 = sphi 0, %s25
      %s29 = sphi 0, %s28
      %s45 = sphi 0, %s29
      %s49 = sphi 0, %s49
      %s51 = sphi 0, %s49
      %s52 = sphi 0, %s51
      %s66 = sphi 0, %s52
      %s70 = sphi 0, %s70
      %s72 = sphi 0, %s70
      %s73 = sphi 0, %s72
      %s87 = sphi 0, %s73
      %s91 = sphi 0, %s91
      %s93 = sphi 0, %s91
      %s94 = sphi 0, %s93
      %s108 = sphi 0, %s94
      %s112 = sphi 0, %s112
      %s114 = sphi 0, %s112
      %s115 = sphi 0, %s114
      %s129 = sphi 0, %s115
      %s133 = sphi 0, %s133
      %s135 = sphi 0, %s133
      %s136 = sphi 0, %s135
      %s150 = sphi 0, %s136
      %s154 = sphi 0, %s154
      %s156 = sphi 0, %s154
      %s157 = sphi 0, %s156
      %s171 = sphi 0, %s157
      %s175 = sphi 0, %s175
      %s177 = sphi 0, %s175
      %s178 = sphi 0, %s177
      %s192 = sphi 0, %s178
      %s196 = sphi 0, %s196
      %s198 = sphi 0, %s196
      %s199 = sphi 0, %s198
      %s213 = sphi 0, %s199
      %s219 = sphi 0, %s221
      %s222 = sphi 0, %s219
      %s223 = sphi 0, %s222
      %s239 = sphi 0, %s223
    $region4: #{ae_encoder_forward.1} parent=1 // loop_header_branch
      %18 = sbr.rel (%p16) target = $region8
    $region5: #{ae_encoder_forward.1} parent=1 // loop_body
      %s20 = ssub.s32 %s15, 1
      %s21 = ssub.s32 %s15, 2
      %s22 = sadd.s32 %s15, 1
      %s23 = ssub.s32 %s15, %s22
      %p24 = scmp.eq.s32.totalorder %s23, 0
      %s26 = sadd.s32 %s25, 1
      %s27 = scalar_select %p24, %s25, %s26
      %p30 = pneg %p24
      %p31 = scmp.eq.s32.totalorder %s15, 6
      %p32 = por %p30, %p31
      %p33 = scmp.ne.s32.totalorder %s25, %s28
      %p34 = scmp.eq.s32.totalorder %s15, 0
      %p35 = por %p33, %p34
      %p36 = scmp.ne.s32.totalorder %s25, %s28
      %p37 = scmp.eq.s32.totalorder %s20, 6
      %p38 = por %p36, %p37
      %p39 = scmp.ne.s32.totalorder %s28, %s29
      %p40 = scmp.eq.s32.totalorder %s20, 0
      %p41 = por %p39, %p40
      %p42 = scmp.ne.s32.totalorder %s28, %s29
      %p43 = scmp.eq.s32.totalorder %s21, 6
      %p44 = por %p42, %p43
      %p46 = scmp.ne.s32.totalorder %s29, %s45
      %p47 = scmp.eq.s32.totalorder %s21, 0
      %p48 = por %p46, %p47
      %s50 = sadd.s32 %s49, 1
      %p53 = scmp.eq.s32.totalorder %s15, 6
      %p54 = scmp.ne.s32.totalorder %s49, %s51
      %p55 = scmp.eq.s32.totalorder %s15, 0
      %p56 = por %p54, %p55
      %p57 = scmp.ne.s32.totalorder %s49, %s51
      %p58 = scmp.eq.s32.totalorder %s20, 6
      %p59 = por %p57, %p58
      %p60 = scmp.ne.s32.totalorder %s51, %s52
      %p61 = scmp.eq.s32.totalorder %s20, 0
      %p62 = por %p60, %p61
      %p63 = scmp.ne.s32.totalorder %s51, %s52
      %p64 = scmp.eq.s32.totalorder %s21, 6
      %p65 = por %p63, %p64
      %p67 = scmp.ne.s32.totalorder %s52, %s66
      %p68 = scmp.eq.s32.totalorder %s21, 0
      %p69 = por %p67, %p68
      %s71 = sadd.s32 %s70, 1
      %p74 = scmp.eq.s32.totalorder %s15, 6
      %p75 = scmp.ne.s32.totalorder %s70, %s72
      %p76 = scmp.eq.s32.totalorder %s15, 0
      %p77 = por %p75, %p76
      %p78 = scmp.ne.s32.totalorder %s70, %s72
      %p79 = scmp.eq.s32.totalorder %s20, 6
      %p80 = por %p78, %p79
      %p81 = scmp.ne.s32.totalorder %s72, %s73
      %p82 = scmp.eq.s32.totalorder %s20, 0
      %p83 = por %p81, %p82
      %p84 = scmp.ne.s32.totalorder %s72, %s73
      %p85 = scmp.eq.s32.totalorder %s21, 6
      %p86 = por %p84, %p85
      %p88 = scmp.ne.s32.totalorder %s73, %s87
      %p89 = scmp.eq.s32.totalorder %s21, 0
      %p90 = por %p88, %p89
      %s92 = sadd.s32 %s91, 1
      %p95 = scmp.eq.s32.totalorder %s15, 6
      %p96 = scmp.ne.s32.totalorder %s91, %s93
      %p97 = scmp.eq.s32.totalorder %s15, 0
      %p98 = por %p96, %p97
      %p99 = scmp.ne.s32.totalorder %s91, %s93
      %p100 = scmp.eq.s32.totalorder %s20, 6
      %p101 = por %p99, %p100
      %p102 = scmp.ne.s32.totalorder %s93, %s94
      %p103 = scmp.eq.s32.totalorder %s20, 0
      %p104 = por %p102, %p103
      %p105 = scmp.ne.s32.totalorder %s93, %s94
      %p106 = scmp.eq.s32.totalorder %s21, 6
      %p107 = por %p105, %p106
      %p109 = scmp.ne.s32.totalorder %s94, %s108
      %p110 = scmp.eq.s32.totalorder %s21, 0
      %p111 = por %p109, %p110
      %s113 = sadd.s32 %s112, 1
      %p116 = scmp.eq.s32.totalorder %s15, 6
      %p117 = scmp.ne.s32.totalorder %s112, %s114
      %p118 = scmp.eq.s32.totalorder %s15, 0
      %p119 = por %p117, %p118
      %p120 = scmp.ne.s32.totalorder %s112, %s114
      %p121 = scmp.eq.s32.totalorder %s20, 6
      %p122 = por %p120, %p121
      %p123 = scmp.ne.s32.totalorder %s114, %s115
      %p124 = scmp.eq.s32.totalorder %s20, 0
      %p125 = por %p123, %p124
      %p126 = scmp.ne.s32.totalorder %s114, %s115
      %p127 = scmp.eq.s32.totalorder %s21, 6
      %p128 = por %p126, %p127
      %p130 = scmp.ne.s32.totalorder %s115, %s129
      %p131 = scmp.eq.s32.totalorder %s21, 0
      %p132 = por %p130, %p131
      %s134 = sadd.s32 %s133, 1
      %p137 = scmp.eq.s32.totalorder %s15, 6
      %p138 = scmp.ne.s32.totalorder %s133, %s135
      %p139 = scmp.eq.s32.totalorder %s15, 0
      %p140 = por %p138, %p139
      %p141 = scmp.ne.s32.totalorder %s133, %s135
      %p142 = scmp.eq.s32.totalorder %s20, 6
      %p143 = por %p141, %p142
      %p144 = scmp.ne.s32.totalorder %s135, %s136
      %p145 = scmp.eq.s32.totalorder %s20, 0
      %p146 = por %p144, %p145
      %p147 = scmp.ne.s32.totalorder %s135, %s136
      %p148 = scmp.eq.s32.totalorder %s21, 6
      %p149 = por %p147, %p148
      %p151 = scmp.ne.s32.totalorder %s136, %s150
      %p152 = scmp.eq.s32.totalorder %s21, 0
      %p153 = por %p151, %p152
      %s155 = sadd.s32 %s154, 1
      %p158 = scmp.eq.s32.totalorder %s15, 6
      %p159 = scmp.ne.s32.totalorder %s154, %s156
      %p160 = scmp.eq.s32.totalorder %s15, 0
      %p161 = por %p159, %p160
      %p162 = scmp.ne.s32.totalorder %s154, %s156
      %p163 = scmp.eq.s32.totalorder %s20, 6
      %p164 = por %p162, %p163
      %p165 = scmp.ne.s32.totalorder %s156, %s157
      %p166 = scmp.eq.s32.totalorder %s20, 0
      %p167 = por %p165, %p166
      %p168 = scmp.ne.s32.totalorder %s156, %s157
      %p169 = scmp.eq.s32.totalorder %s21, 6
      %p170 = por %p168, %p169
      %p172 = scmp.ne.s32.totalorder %s157, %s171
      %p173 = scmp.eq.s32.totalorder %s21, 0
      %p174 = por %p172, %p173
      %s176 = sadd.s32 %s175, 1
      %p179 = scmp.eq.s32.totalorder %s15, 6
      %p180 = scmp.ne.s32.totalorder %s175, %s177
      %p181 = scmp.eq.s32.totalorder %s15, 0
      %p182 = por %p180, %p181
      %p183 = scmp.ne.s32.totalorder %s175, %s177
      %p184 = scmp.eq.s32.totalorder %s20, 6
      %p185 = por %p183, %p184
      %p186 = scmp.ne.s32.totalorder %s177, %s178
      %p187 = scmp.eq.s32.totalorder %s20, 0
      %p188 = por %p186, %p187
      %p189 = scmp.ne.s32.totalorder %s177, %s178
      %p190 = scmp.eq.s32.totalorder %s21, 6
      %p191 = por %p189, %p190
      %p193 = scmp.ne.s32.totalorder %s178, %s192
      %p194 = scmp.eq.s32.totalorder %s21, 0
      %p195 = por %p193, %p194
      %s197 = sadd.s32 %s196, 1
      %p200 = scmp.eq.s32.totalorder %s15, 6
      %p201 = scmp.ne.s32.totalorder %s196, %s198
      %p202 = scmp.eq.s32.totalorder %s15, 0
      %p203 = por %p201, %p202
      %p204 = scmp.ne.s32.totalorder %s196, %s198
      %p205 = scmp.eq.s32.totalorder %s20, 6
      %p206 = por %p204, %p205
      %p207 = scmp.ne.s32.totalorder %s198, %s199
      %p208 = scmp.eq.s32.totalorder %s20, 0
      %p209 = por %p207, %p208
      %p210 = scmp.ne.s32.totalorder %s198, %s199
      %p211 = scmp.eq.s32.totalorder %s21, 6
      %p212 = por %p210, %p211
      %p214 = scmp.ne.s32.totalorder %s199, %s213
      %p215 = scmp.eq.s32.totalorder %s21, 0
      %p216 = por %p214, %p215
      %s217 = ssub.s32 %s15, %s22
      %p218 = scmp.eq.s32.totalorder %s217, 0
      %s220 = sadd.s32 %s219, 1
      %s221 = scalar_select %p218, %s219, %s220
      %p224 = pneg %p218
      %p225 = scmp.eq.s32.totalorder %s15, 6
      %p226 = por %p224, %p225
      %p227 = scmp.ne.s32.totalorder %s219, %s222
      %p228 = scmp.eq.s32.totalorder %s15, 0
      %p229 = por %p227, %p228
      %p230 = scmp.ne.s32.totalorder %s219, %s222
      %p231 = scmp.eq.s32.totalorder %s20, 6
      %p232 = por %p230, %p231
      %p233 = scmp.ne.s32.totalorder %s222, %s223
      %p234 = scmp.eq.s32.totalorder %s20, 0
      %p235 = por %p233, %p234
      %p236 = scmp.ne.s32.totalorder %s222, %s223
      %p237 = scmp.eq.s32.totalorder %s21, 6
      %p238 = por %p236, %p237
      %p240 = scmp.ne.s32.totalorder %s223, %s239
      %p241 = scmp.eq.s32.totalorder %s21, 0
      %p242 = por %p240, %p241
      %p243 = scmp.le.s32.totalorder 1, %s15
      %p244 = scmp.lt.s32.totalorder %s15, 8
      %p245 = pnand %p243, %p244
      %p246 = pneg %p245
      // Predicated region
      $region9: #{ae_encoder_forward.1} parent=5 // pred_check
        _
      $region10: #{ae_encoder_forward.1} parent=5 // pred_check_branch
        %248 = sbr.rel (%p245) target = $region12
      $region11: #{ae_encoder_forward.1} parent=5 // pred_region
        %s249 = ssub.s32 %s15, 1
        // Predicated region
        $region13: #{ae_encoder_forward.1} parent=11 // pred_check
          %p250 = pneg %p62
        $region14: #{ae_encoder_forward.1} parent=11 // pred_check_branch
          %252 = sbr.rel (%p250) target = $region16
        $region15: #{ae_encoder_forward.1} parent=11 // pred_region
          _
        $region16: #{ae_encoder_forward.1} parent=11 // pred_fallthru
          _
        // Predicated region
        $region17: #{ae_encoder_forward.1} parent=11 // pred_check
          %p253 = pneg %p83
        $region18: #{ae_encoder_forward.1} parent=11 // pred_check_branch
          %255 = sbr.rel (%p253) target = $region20
        $region19: #{ae_encoder_forward.1} parent=11 // pred_region
          _
        $region20: #{ae_encoder_forward.1} parent=11 // pred_fallthru
          _
        // Predicated region
        $region21: #{ae_encoder_forward.1} parent=11 // pred_check
          %p256 = pneg %p104
        $region22: #{ae_encoder_forward.1} parent=11 // pred_check_branch
          %258 = sbr.rel (%p256) target = $region24
        $region23: #{ae_encoder_forward.1} parent=11 // pred_region
          _
        $region24: #{ae_encoder_forward.1} parent=11 // pred_fallthru
          _
        // Predicated region
        $region25: #{ae_encoder_forward.1} parent=11 // pred_check
          %p259 = pneg %p125
        $region26: #{ae_encoder_forward.1} parent=11 // pred_check_branch
          %261 = sbr.rel (%p259) target = $region28
        $region27: #{ae_encoder_forward.1} parent=11 // pred_region
          _
        $region28: #{ae_encoder_forward.1} parent=11 // pred_fallthru
          _
        // Predicated region
        $region29: #{ae_encoder_forward.1} parent=11 // pred_check
          %p262 = pneg %p146
        $region30: #{ae_encoder_forward.1} parent=11 // pred_check_branch
          %264 = sbr.rel (%p262) target = $region32
        $region31: #{ae_encoder_forward.1} parent=11 // pred_region
          _
        $region32: #{ae_encoder_forward.1} parent=11 // pred_fallthru
          _
        // Predicated region
        $region33: #{ae_encoder_forward.1} parent=11 // pred_check
          %p265 = pneg %p167
        $region34: #{ae_encoder_forward.1} parent=11 // pred_check_branch
          %267 = sbr.rel (%p265) target = $region36
        $region35: #{ae_encoder_forward.1} parent=11 // pred_region
          _
        $region36: #{ae_encoder_forward.1} parent=11 // pred_fallthru
          _
        // Predicated region
        $region37: #{ae_encoder_forward.1} parent=11 // pred_check
          %p268 = pneg %p188
        $region38: #{ae_encoder_forward.1} parent=11 // pred_check_branch
          %270 = sbr.rel (%p268) target = $region40
        $region39: #{ae_encoder_forward.1} parent=11 // pred_region
          _
        $region40: #{ae_encoder_forward.1} parent=11 // pred_fallthru
          _
        // Predicated region
        $region41: #{ae_encoder_forward.1} parent=11 // pred_check
          %p271 = pneg %p209
        $region42: #{ae_encoder_forward.1} parent=11 // pred_check_branch
          %273 = sbr.rel (%p271) target = $region44
        $region43: #{ae_encoder_forward.1} parent=11 // pred_region
          _
        $region44: #{ae_encoder_forward.1} parent=11 // pred_fallthru
          _
      $region12: #{ae_encoder_forward.1} parent=5 // pred_fallthru
        _
      %p274 = scmp.lt.s32.totalorder %s15, 7
      // Predicated region
      $region45: #{ae_encoder_forward.1} parent=5 // pred_check
        %p275 = pneg %p274
      $region46: #{ae_encoder_forward.1} parent=5 // pred_check_branch
        %277 = sbr.rel (%p275) target = $region48
      $region47: #{ae_encoder_forward.1} parent=5 // pred_region
        // Predicated region
        $region49: #{ae_encoder_forward.1} parent=47 // pred_check
          %p278 = pneg %p35
        $region50: #{ae_encoder_forward.1} parent=47 // pred_check_branch
          %280 = sbr.rel (%p278) target = $region52
        $region51: #{ae_encoder_forward.1} parent=47 // pred_region
          %s281 = smul.u32 6, %s15
          %s282 = ssub.s32 38, %s281
          %p283 = scmp.lt.s32.totalorder %s282, 6
          %s284 = scalar_select %p283, %s282, 6
          %s285 = smul.u32 128, %s284
          %p286 = scmp.lt.s32.totalorder %s281, 37
          %s287 = scalar_select %p286, %s281, 37
          %s288 = smul.addr %s287, 8
          %s289 = scalar_lea.vmem %s0, %s288
          %s290 = smul.u32 6, %s15
          %s291 = ssub.s32 38, %s290
          %p292 = scmp.lt.s32.totalorder %s291, 6
          %s293 = scalar_select %p292, %s291, 6
          %s294 = smul.u32 128, %s293
        $region52: #{ae_encoder_forward.1} parent=47 // pred_fallthru
          _
      $region48: #{ae_encoder_forward.1} parent=5 // pred_fallthru
        _
      %p295 = scmp.le.s32.totalorder 1, %s15
      %p296 = scmp.lt.s32.totalorder %s15, 8
      %p297 = pnand %p295, %p296
      %p298 = pneg %p297
      // Predicated region
      $region53: #{ae_encoder_forward.1} parent=5 // pred_check
        _
      $region54: #{ae_encoder_forward.1} parent=5 // pred_check_branch
        %300 = sbr.rel (%p297) target = $region56
      $region55: #{ae_encoder_forward.1} parent=5 // pred_region
        %s301 = ssub.s32 %s15, 1
        %s302 = smul.u32 6, %s20
        %s303 = ssub.s32 38, %s302
        %p304 = scmp.lt.s32.totalorder %s303, 6
        %s305 = scalar_select %p304, %s303, 6
        %s306 = smul.u32 128, %s305
        %p307 = scmp.lt.s32.totalorder %s302, 37
        %s308 = scalar_select %p307, %s302, 37
        %s309 = smul.addr %s308, 8
        %s310 = scalar_lea.vmem %s0, %s309
        %p311 = pneg %p41
        %p312 = pneg %p38
        %p313 = pneg %p62
        %p314 = pneg %p59
        %p315 = pneg %p83
        %p316 = pneg %p80
        %p317 = pneg %p104
        %p318 = pneg %p101
        %p319 = pneg %p125
        %p320 = pneg %p122
        %p321 = pneg %p146
        %p322 = pneg %p143
        %p323 = pneg %p167
        %p324 = pneg %p164
        %p325 = pneg %p188
        %p326 = pneg %p185
        %p327 = pneg %p209
        %p328 = pneg %p206
        %p329 = pneg %p235
        %p330 = pneg %p232
        %s331 = sand.u32 %s222, 1
        %s332 = sand.u32 %s222, 1
        %s333 = smul.addr %s332, 24
        %s334 = scalar_lea.vmem [#allocation2], %s333
        %s335 = smul.u32 6, %s20
        %s336 = ssub.s32 38, %s335
        %p337 = scmp.lt.s32.totalorder %s336, 6
        %s338 = scalar_select %p337, %s336, 6
        %s339 = smul.u32 128, %s338
        %p340 = scmp.lt.s32.totalorder %s335, 37
        %s341 = scalar_select %p340, %s335, 37
        %s342 = smul.addr %s341, 8
        %s343 = scalar_lea.vmem %s0, %s342
        %s344 = smul.u32 6, %s20
        %s345 = ssub.s32 38, %s344
        %p346 = scmp.lt.s32.totalorder %s345, 6
        %s347 = scalar_select %p346, %s345, 6
        %s348 = smul.u32 128, %s347
        %s349 = smul.u32 6, %s20
        %s350 = ssub.s32 38, %s349
        %p351 = scmp.lt.s32.totalorder %s350, 6
        %s352 = scalar_select %p351, %s350, 6
        %s353 = smul.u32 64, %s352
        %v355 = vld [vmem:[%s343] sm:$0xff]
        %v356 = vld [vmem:[%s343 + $0x8] sm:$0xff]
        %v357 = vld [vmem:[%s343 + $0x10] sm:$0xff]
        %v358 = vld [vmem:[%s343 + $0x18] sm:$0xff]
        %v359 = vld [vmem:[%s343 + $0x20] sm:$0xff]
        %v360 = vld [vmem:[%s343 + $0x28] sm:$0xff]
        %v361 = vpack.c.bf16 %v356, %v355
        %v362 = vpack.c.bf16 %v358, %v357
        %v363 = vpack.c.bf16 %v360, %v359
        %v364 = vld [vmem:[%s1] sm:$0xf]
        %v365 = vld [vmem:[%s1 + $0x4] sm:$0xf]
        %v366 = vld [vmem:[%s1 + $0x8] sm:$0xf]
        %v367 = vld [vmem:[%s1 + $0xc] sm:$0xf]
        %v368 = vld [vmem:[%s2] sm:$0x1]
        %v370 = vlaneseq
        %v371 = vshrl.u32 %v370, 7
        %v372 = vsub.s32 0, %v371
        %v373 = vrot.slane %v368, %v372
        %v379 = vunpack.c.l.b16 %v364
        %v380 = vunpack.c.l.b16 %v365
        %v381 = vunpack.c.l.b16 %v366
        %v382 = vunpack.c.l.b16 %v367
        %v383 = vpack.c.b16 %v380, %v379
        %v384 = vpack.c.b16 %v382, %v381
        %vm387 = vcmask 261120
        %v389 = vsel %vm387, %v361, 0
        %v392 = vsel %vm387, %v362, 0
        %v395 = vsel %vm387, %v363, 0
        %397 = vmatprep.subr.bf16.mxu0 0
        %398 = vmatpush1.bf16.msra.mxu0 0
        %399 = vmatprep.subr.bf16.mxu0 0
        %400 = vmatpush1.bf16.msra.mxu0 0
        %401 = vmatprep.subr.bf16.mxu0 0
        %402 = vmatpush1.bf16.msra.mxu0 0
        %403 = vmatprep.subr.bf16.mxu0 0
        %404 = vmatpush1.bf16.msra.mxu0 0
        %405 = vmatprep.subr.bf16.mxu0 0
        %406 = vmatpush1.bf16.msra.mxu0 0
        %407 = vmatprep.subr.bf16.mxu0 0
        %408 = vmatpush1.bf16.msra.mxu0 0
        %409 = vmatprep.subr.bf16.mxu0 0
        %410 = vmatpush1.bf16.msra.mxu0 %v384
        %411 = vmatprep.subr.bf16.mxu0 0
        %412 = vmatpush1.bf16.msra.mxu0 %v383
        %413 = vmatprep.subr.bf16.mxu0 0
        %414 = vmatpush2.bf16.msra.mxu0 0
        %415 = vmatprep.subr.bf16.mxu0 0
        %416 = vmatpush2.bf16.msra.mxu0 0
        %417 = vmatprep.subr.bf16.mxu0 0
        %418 = vmatpush2.bf16.msra.mxu0 0
        %419 = vmatprep.subr.bf16.mxu0 0
        %420 = vmatpush2.bf16.msra.mxu0 0
        %421 = vmatprep.subr.bf16.mxu0 0
        %422 = vmatpush2.bf16.msra.mxu0 0
        %423 = vmatprep.subr.bf16.mxu0 0
        %424 = vmatpush2.bf16.msra.mxu0 0
        %425 = vmatprep.subr.bf16.mxu0 0
        %426 = vmatpush2.bf16.msra.mxu0 0
        %427 = vmatprep.subr.bf16.mxu0 0
        %428 = vmatpush2.bf16.msra.mxu0 0
        %429 = vmatprep.mubr.bf16.mxu0 0
        %430 = vmatmul.mubr.bf16.gmra.mxu0 %v389
        %v431 = vpop.f32.mrf.mxu0
        %v432 = vadd.f32 %v373, %v431
        %v433 = vpop.f32.mrf.mxu0
        %v434 = vpop.f32.mrf.mxu0
        %v435 = vadd.f32 %v373, %v434
        %v436 = vpop.f32.mrf.mxu0
        %437 = vmatprep.mubr.bf16.mxu0 0
        %438 = vmatmul.mubr.bf16.gmra.mxu0 %v392
        %v439 = vpop.f32.mrf.mxu0
        %v440 = vadd.f32 %v373, %v439
        %v441 = vpop.f32.mrf.mxu0
        %v442 = vpop.f32.mrf.mxu0
        %v443 = vadd.f32 %v373, %v442
        %v444 = vpop.f32.mrf.mxu0
        %445 = vmatprep.mubr.bf16.mxu0 0
        %446 = vmatmul.mubr.bf16.gmra.mxu0 %v395
        %v447 = vpop.f32.mrf.mxu0
        %v448 = vadd.f32 %v373, %v447
        %v449 = vpop.f32.mrf.mxu0
        %v450 = vpop.f32.mrf.mxu0
        %v451 = vadd.f32 %v373, %v450
        %v452 = vpop.f32.mrf.mxu0
        %453 = vdwg.mxu0
        %v454 = vmul.f32 %v432, 0.2
        %v455 = vmul.f32 %v435, 0.2
        %v456 = vmul.f32 %v440, 0.2
        %v457 = vmul.f32 %v443, 0.2
        %v458 = vmul.f32 %v448, 0.2
        %v459 = vmul.f32 %v451, 0.2
        %v460 = vmax.f32 %v432, %v454
        %v461 = vmax.f32 %v435, %v455
        %v462 = vmax.f32 %v440, %v456
        %v463 = vmax.f32 %v443, %v457
        %v464 = vmax.f32 %v448, %v458
        %v465 = vmax.f32 %v451, %v459
        %v466 = vpack.c.bf16 %v461, %v460
        %v467 = vpack.c.bf16 %v463, %v462
        %v468 = vpack.c.bf16 %v465, %v464
        %v469 = vld [vmem:[%s3] sm:$0xf]
        %v470 = vld [vmem:[%s3 + $0x4] sm:$0xf]
        %v471 = vld [vmem:[%s3 + $0x8] sm:$0xf]
        %v472 = vld [vmem:[%s3 + $0xc] sm:$0xf]
        %v473 = vld [vmem:[%s3 + $0x10] sm:$0xf]
        %v474 = vld [vmem:[%s3 + $0x14] sm:$0xf]
        %v475 = vld [vmem:[%s3 + $0x18] sm:$0xf]
        %v476 = vld [vmem:[%s3 + $0x1c] sm:$0xf]
        %v477 = vld [vmem:[%s3 + $0x20] sm:$0xf]
        %v478 = vld [vmem:[%s3 + $0x24] sm:$0xf]
        %v479 = vld [vmem:[%s3 + $0x28] sm:$0xf]
        %v480 = vld [vmem:[%s3 + $0x2c] sm:$0xf]
        %v481 = vld [vmem:[%s3 + $0x30] sm:$0xf]
        %v482 = vld [vmem:[%s3 + $0x34] sm:$0xf]
        %v483 = vld [vmem:[%s3 + $0x38] sm:$0xf]
        %v484 = vld [vmem:[%s3 + $0x3c] sm:$0xf]
        %v485 = vld [vmem:[%s4] sm:$0x1]
        %v487 = vlaneseq
        %v488 = vshrl.u32 %v487, 7
        %v489 = vsub.s32 0, %v488
        %v490 = vrot.slane %v485, %v489
        %v508 = vunpack.c.l.b16 %v469
        %v509 = vunpack.c.l.b16 %v470
        %v510 = vunpack.c.l.b16 %v471
        %v511 = vunpack.c.l.b16 %v472
        %v512 = vunpack.c.l.b16 %v473
        %v513 = vunpack.c.l.b16 %v474
        %v514 = vunpack.c.l.b16 %v475
        %v515 = vunpack.c.l.b16 %v476
        %v516 = vunpack.c.l.b16 %v477
        %v517 = vunpack.c.l.b16 %v478
        %v518 = vunpack.c.l.b16 %v479
        %v519 = vunpack.c.l.b16 %v480
        %v520 = vunpack.c.l.b16 %v481
        %v521 = vunpack.c.l.b16 %v482
        %v522 = vunpack.c.l.b16 %v483
        %v523 = vunpack.c.l.b16 %v484
        %v524 = vpack.c.b16 %v509, %v508
        %v525 = vpack.c.b16 %v511, %v510
        %v526 = vpack.c.b16 %v513, %v512
        %v527 = vpack.c.b16 %v515, %v514
        %v528 = vpack.c.b16 %v517, %v516
        %v529 = vpack.c.b16 %v519, %v518
        %v530 = vpack.c.b16 %v521, %v520
        %v531 = vpack.c.b16 %v523, %v522
        %540 = vmatprep.subr.bf16.mxu0 0
        %541 = vmatpush1.bf16.msra.mxu0 %v531
        %542 = vmatprep.subr.bf16.mxu0 0
        %543 = vmatpush1.bf16.msra.mxu0 %v530
        %544 = vmatprep.subr.bf16.mxu0 0
        %545 = vmatpush1.bf16.msra.mxu0 %v529
        %546 = vmatprep.subr.bf16.mxu0 0
        %547 = vmatpush1.bf16.msra.mxu0 %v528
        %548 = vmatprep.subr.bf16.mxu0 0
        %549 = vmatpush1.bf16.msra.mxu0 %v527
        %550 = vmatprep.subr.bf16.mxu0 0
        %551 = vmatpush1.bf16.msra.mxu0 %v526
        %552 = vmatprep.subr.bf16.mxu0 0
        %553 = vmatpush1.bf16.msra.mxu0 %v525
        %554 = vmatprep.subr.bf16.mxu0 0
        %555 = vmatpush1.bf16.msra.mxu0 %v524
        %556 = vmatprep.subr.bf16.mxu0 0
        %557 = vmatpush2.bf16.msra.mxu0 0
        %558 = vmatprep.subr.bf16.mxu0 0
        %559 = vmatpush2.bf16.msra.mxu0 0
        %560 = vmatprep.subr.bf16.mxu0 0
        %561 = vmatpush2.bf16.msra.mxu0 0
        %562 = vmatprep.subr.bf16.mxu0 0
        %563 = vmatpush2.bf16.msra.mxu0 0
        %564 = vmatprep.subr.bf16.mxu0 0
        %565 = vmatpush2.bf16.msra.mxu0 0
        %566 = vmatprep.subr.bf16.mxu0 0
        %567 = vmatpush2.bf16.msra.mxu0 0
        %568 = vmatprep.subr.bf16.mxu0 0
        %569 = vmatpush2.bf16.msra.mxu0 0
        %570 = vmatprep.subr.bf16.mxu0 0
        %571 = vmatpush2.bf16.msra.mxu0 0
        %572 = vmatprep.mubr.bf16.mxu0 0
        %573 = vmatmul.mubr.bf16.gmra.mxu0 %v466
        %v574 = vpop.f32.mrf.mxu0
        %v575 = vadd.f32 %v490, %v574
        %v576 = vpop.f32.mrf.mxu0
        %v577 = vpop.f32.mrf.mxu0
        %v578 = vadd.f32 %v490, %v577
        %v579 = vpop.f32.mrf.mxu0
        %580 = vmatprep.mubr.bf16.mxu0 0
        %581 = vmatmul.mubr.bf16.gmra.mxu0 %v467
        %v582 = vpop.f32.mrf.mxu0
        %v583 = vadd.f32 %v490, %v582
        %v584 = vpop.f32.mrf.mxu0
        %v585 = vpop.f32.mrf.mxu0
        %v586 = vadd.f32 %v490, %v585
        %v587 = vpop.f32.mrf.mxu0
        %588 = vmatprep.mubr.bf16.mxu0 0
        %589 = vmatmul.mubr.bf16.gmra.mxu0 %v468
        %v590 = vpop.f32.mrf.mxu0
        %v591 = vadd.f32 %v490, %v590
        %v592 = vpop.f32.mrf.mxu0
        %v593 = vpop.f32.mrf.mxu0
        %v594 = vadd.f32 %v490, %v593
        %v595 = vpop.f32.mrf.mxu0
        %596 = vdwg.mxu0
        %v597 = vmul.f32 %v575, 0.2
        %v598 = vmul.f32 %v578, 0.2
        %v599 = vmul.f32 %v583, 0.2
        %v600 = vmul.f32 %v586, 0.2
        %v601 = vmul.f32 %v591, 0.2
        %v602 = vmul.f32 %v594, 0.2
        %v603 = vmax.f32 %v575, %v597
        %v604 = vmax.f32 %v578, %v598
        %v605 = vmax.f32 %v583, %v599
        %v606 = vmax.f32 %v586, %v600
        %v607 = vmax.f32 %v591, %v601
        %v608 = vmax.f32 %v594, %v602
        %v609 = vpack.c.bf16 %v604, %v603
        %v610 = vpack.c.bf16 %v606, %v605
        %v611 = vpack.c.bf16 %v608, %v607
        %v612 = vld [vmem:[%s5] sm:$0xf]
        %v613 = vld [vmem:[%s5 + $0x4] sm:$0xf]
        %v614 = vld [vmem:[%s5 + $0x8] sm:$0xf]
        %v615 = vld [vmem:[%s5 + $0xc] sm:$0xf]
        %v616 = vld [vmem:[%s5 + $0x10] sm:$0xf]
        %v617 = vld [vmem:[%s5 + $0x14] sm:$0xf]
        %v618 = vld [vmem:[%s5 + $0x18] sm:$0xf]
        %v619 = vld [vmem:[%s5 + $0x1c] sm:$0xf]
        %v620 = vld [vmem:[%s5 + $0x20] sm:$0xf]
        %v621 = vld [vmem:[%s5 + $0x24] sm:$0xf]
        %v622 = vld [vmem:[%s5 + $0x28] sm:$0xf]
        %v623 = vld [vmem:[%s5 + $0x2c] sm:$0xf]
        %v624 = vld [vmem:[%s5 + $0x30] sm:$0xf]
        %v625 = vld [vmem:[%s5 + $0x34] sm:$0xf]
        %v626 = vld [vmem:[%s5 + $0x38] sm:$0xf]
        %v627 = vld [vmem:[%s5 + $0x3c] sm:$0xf]
        %v628 = vld [vmem:[%s6] sm:$0x1]
        %v630 = vlaneseq
        %v631 = vshrl.u32 %v630, 7
        %v632 = vsub.s32 0, %v631
        %v633 = vrot.slane %v628, %v632
        %v651 = vunpack.c.l.b16 %v612
        %v652 = vunpack.c.l.b16 %v613
        %v653 = vunpack.c.l.b16 %v614
        %v654 = vunpack.c.l.b16 %v615
        %v655 = vunpack.c.l.b16 %v616
        %v656 = vunpack.c.l.b16 %v617
        %v657 = vunpack.c.l.b16 %v618
        %v658 = vunpack.c.l.b16 %v619
        %v659 = vunpack.c.l.b16 %v620
        %v660 = vunpack.c.l.b16 %v621
        %v661 = vunpack.c.l.b16 %v622
        %v662 = vunpack.c.l.b16 %v623
        %v663 = vunpack.c.l.b16 %v624
        %v664 = vunpack.c.l.b16 %v625
        %v665 = vunpack.c.l.b16 %v626
        %v666 = vunpack.c.l.b16 %v627
        %v667 = vpack.c.b16 %v652, %v651
        %v668 = vpack.c.b16 %v654, %v653
        %v669 = vpack.c.b16 %v656, %v655
        %v670 = vpack.c.b16 %v658, %v657
        %v671 = vpack.c.b16 %v660, %v659
        %v672 = vpack.c.b16 %v662, %v661
        %v673 = vpack.c.b16 %v664, %v663
        %v674 = vpack.c.b16 %v666, %v665
        %683 = vmatprep.subr.bf16.mxu0 0
        %684 = vmatpush1.bf16.msra.mxu0 %v674
        %685 = vmatprep.subr.bf16.mxu0 0
        %686 = vmatpush1.bf16.msra.mxu0 %v673
        %687 = vmatprep.subr.bf16.mxu0 0
        %688 = vmatpush1.bf16.msra.mxu0 %v672
        %689 = vmatprep.subr.bf16.mxu0 0
        %690 = vmatpush1.bf16.msra.mxu0 %v671
        %691 = vmatprep.subr.bf16.mxu0 0
        %692 = vmatpush1.bf16.msra.mxu0 %v670
        %693 = vmatprep.subr.bf16.mxu0 0
        %694 = vmatpush1.bf16.msra.mxu0 %v669
        %695 = vmatprep.subr.bf16.mxu0 0
        %696 = vmatpush1.bf16.msra.mxu0 %v668
        %697 = vmatprep.subr.bf16.mxu0 0
        %698 = vmatpush1.bf16.msra.mxu0 %v667
        %699 = vmatprep.subr.bf16.mxu0 0
        %700 = vmatpush2.bf16.msra.mxu0 0
        %701 = vmatprep.subr.bf16.mxu0 0
        %702 = vmatpush2.bf16.msra.mxu0 0
        %703 = vmatprep.subr.bf16.mxu0 0
        %704 = vmatpush2.bf16.msra.mxu0 0
        %705 = vmatprep.subr.bf16.mxu0 0
        %706 = vmatpush2.bf16.msra.mxu0 0
        %707 = vmatprep.subr.bf16.mxu0 0
        %708 = vmatpush2.bf16.msra.mxu0 0
        %709 = vmatprep.subr.bf16.mxu0 0
        %710 = vmatpush2.bf16.msra.mxu0 0
        %711 = vmatprep.subr.bf16.mxu0 0
        %712 = vmatpush2.bf16.msra.mxu0 0
        %713 = vmatprep.subr.bf16.mxu0 0
        %714 = vmatpush2.bf16.msra.mxu0 0
        %715 = vmatprep.mubr.bf16.mxu0 0
        %716 = vmatmul.mubr.bf16.gmra.mxu0 %v609
        %v717 = vpop.f32.mrf.mxu0
        %v718 = vadd.f32 %v633, %v717
        %v719 = vpop.f32.mrf.mxu0
        %v720 = vpop.f32.mrf.mxu0
        %v721 = vadd.f32 %v633, %v720
        %v722 = vpop.f32.mrf.mxu0
        %723 = vmatprep.mubr.bf16.mxu0 0
        %724 = vmatmul.mubr.bf16.gmra.mxu0 %v610
        %v725 = vpop.f32.mrf.mxu0
        %v726 = vadd.f32 %v633, %v725
        %v727 = vpop.f32.mrf.mxu0
        %v728 = vpop.f32.mrf.mxu0
        %v729 = vadd.f32 %v633, %v728
        %v730 = vpop.f32.mrf.mxu0
        %731 = vmatprep.mubr.bf16.mxu0 0
        %732 = vmatmul.mubr.bf16.gmra.mxu0 %v611
        %v733 = vpop.f32.mrf.mxu0
        %v734 = vadd.f32 %v633, %v733
        %v735 = vpop.f32.mrf.mxu0
        %v736 = vpop.f32.mrf.mxu0
        %v737 = vadd.f32 %v633, %v736
        %v738 = vpop.f32.mrf.mxu0
        %739 = vdwg.mxu0
        %v740 = vmul.f32 %v718, 0.2
        %v741 = vmul.f32 %v721, 0.2
        %v742 = vmul.f32 %v726, 0.2
        %v743 = vmul.f32 %v729, 0.2
        %v744 = vmul.f32 %v734, 0.2
        %v745 = vmul.f32 %v737, 0.2
        %v746 = vmax.f32 %v718, %v740
        %v747 = vmax.f32 %v721, %v741
        %v748 = vmax.f32 %v726, %v742
        %v749 = vmax.f32 %v729, %v743
        %v750 = vmax.f32 %v734, %v744
        %v751 = vmax.f32 %v737, %v745
        %v752 = vpack.c.bf16 %v747, %v746
        %v753 = vpack.c.bf16 %v749, %v748
        %v754 = vpack.c.bf16 %v751, %v750
        %v755 = vld [vmem:[%s7] sm:$0xf]
        %v756 = vld [vmem:[%s7 + $0x4] sm:$0xf]
        %v757 = vld [vmem:[%s7 + $0x8] sm:$0xf]
        %v758 = vld [vmem:[%s7 + $0xc] sm:$0xf]
        %v759 = vld [vmem:[%s7 + $0x10] sm:$0xf]
        %v760 = vld [vmem:[%s7 + $0x14] sm:$0xf]
        %v761 = vld [vmem:[%s7 + $0x18] sm:$0xf]
        %v762 = vld [vmem:[%s7 + $0x1c] sm:$0xf]
        %v763 = vld [vmem:[%s7 + $0x20] sm:$0xf]
        %v764 = vld [vmem:[%s7 + $0x24] sm:$0xf]
        %v765 = vld [vmem:[%s7 + $0x28] sm:$0xf]
        %v766 = vld [vmem:[%s7 + $0x2c] sm:$0xf]
        %v767 = vld [vmem:[%s7 + $0x30] sm:$0xf]
        %v768 = vld [vmem:[%s7 + $0x34] sm:$0xf]
        %v769 = vld [vmem:[%s7 + $0x38] sm:$0xf]
        %v770 = vld [vmem:[%s7 + $0x3c] sm:$0xf]
        %v771 = vld [vmem:[%s8] sm:$0x1]
        %v773 = vlaneseq
        %v774 = vshrl.u32 %v773, 7
        %v775 = vsub.s32 0, %v774
        %v776 = vrot.slane %v771, %v775
        %v794 = vunpack.c.l.b16 %v755
        %v795 = vunpack.c.l.b16 %v756
        %v796 = vunpack.c.l.b16 %v757
        %v797 = vunpack.c.l.b16 %v758
        %v798 = vunpack.c.l.b16 %v759
        %v799 = vunpack.c.l.b16 %v760
        %v800 = vunpack.c.l.b16 %v761
        %v801 = vunpack.c.l.b16 %v762
        %v802 = vunpack.c.l.b16 %v763
        %v803 = vunpack.c.l.b16 %v764
        %v804 = vunpack.c.l.b16 %v765
        %v805 = vunpack.c.l.b16 %v766
        %v806 = vunpack.c.l.b16 %v767
        %v807 = vunpack.c.l.b16 %v768
        %v808 = vunpack.c.l.b16 %v769
        %v809 = vunpack.c.l.b16 %v770
        %v810 = vpack.c.b16 %v795, %v794
        %v811 = vpack.c.b16 %v797, %v796
        %v812 = vpack.c.b16 %v799, %v798
        %v813 = vpack.c.b16 %v801, %v800
        %v814 = vpack.c.b16 %v803, %v802
        %v815 = vpack.c.b16 %v805, %v804
        %v816 = vpack.c.b16 %v807, %v806
        %v817 = vpack.c.b16 %v809, %v808
        %826 = vmatprep.subr.bf16.mxu0 0
        %827 = vmatpush1.bf16.msra.mxu0 %v817
        %828 = vmatprep.subr.bf16.mxu0 0
        %829 = vmatpush1.bf16.msra.mxu0 %v816
        %830 = vmatprep.subr.bf16.mxu0 0
        %831 = vmatpush1.bf16.msra.mxu0 %v815
        %832 = vmatprep.subr.bf16.mxu0 0
        %833 = vmatpush1.bf16.msra.mxu0 %v814
        %834 = vmatprep.subr.bf16.mxu0 0
        %835 = vmatpush1.bf16.msra.mxu0 %v813
        %836 = vmatprep.subr.bf16.mxu0 0
        %837 = vmatpush1.bf16.msra.mxu0 %v812
        %838 = vmatprep.subr.bf16.mxu0 0
        %839 = vmatpush1.bf16.msra.mxu0 %v811
        %840 = vmatprep.subr.bf16.mxu0 0
        %841 = vmatpush1.bf16.msra.mxu0 %v810
        %842 = vmatprep.subr.bf16.mxu0 0
        %843 = vmatpush2.bf16.msra.mxu0 0
        %844 = vmatprep.subr.bf16.mxu0 0
        %845 = vmatpush2.bf16.msra.mxu0 0
        %846 = vmatprep.subr.bf16.mxu0 0
        %847 = vmatpush2.bf16.msra.mxu0 0
        %848 = vmatprep.subr.bf16.mxu0 0
        %849 = vmatpush2.bf16.msra.mxu0 0
        %850 = vmatprep.subr.bf16.mxu0 0
        %851 = vmatpush2.bf16.msra.mxu0 0
        %852 = vmatprep.subr.bf16.mxu0 0
        %853 = vmatpush2.bf16.msra.mxu0 0
        %854 = vmatprep.subr.bf16.mxu0 0
        %855 = vmatpush2.bf16.msra.mxu0 0
        %856 = vmatprep.subr.bf16.mxu0 0
        %857 = vmatpush2.bf16.msra.mxu0 0
        %858 = vmatprep.mubr.bf16.mxu0 0
        %859 = vmatmul.mubr.bf16.gmra.mxu0 %v752
        %v860 = vpop.f32.mrf.mxu0
        %v861 = vadd.f32 %v776, %v860
        %v862 = vpop.f32.mrf.mxu0
        %v863 = vpop.f32.mrf.mxu0
        %v864 = vadd.f32 %v776, %v863
        %v865 = vpop.f32.mrf.mxu0
        %866 = vmatprep.mubr.bf16.mxu0 0
        %867 = vmatmul.mubr.bf16.gmra.mxu0 %v753
        %v868 = vpop.f32.mrf.mxu0
        %v869 = vadd.f32 %v776, %v868
        %v870 = vpop.f32.mrf.mxu0
        %v871 = vpop.f32.mrf.mxu0
        %v872 = vadd.f32 %v776, %v871
        %v873 = vpop.f32.mrf.mxu0
        %874 = vmatprep.mubr.bf16.mxu0 0
        %875 = vmatmul.mubr.bf16.gmra.mxu0 %v754
        %v876 = vpop.f32.mrf.mxu0
        %v877 = vadd.f32 %v776, %v876
        %v878 = vpop.f32.mrf.mxu0
        %v879 = vpop.f32.mrf.mxu0
        %v880 = vadd.f32 %v776, %v879
        %v881 = vpop.f32.mrf.mxu0
        %882 = vdwg.mxu0
        %v883 = vpack.c.bf16 %v864, %v861
        %v884 = vpack.c.bf16 %v872, %v869
        %v885 = vpack.c.bf16 %v880, %v877
        %v889 = vunpack.c.l.b16 %v883
        %v890 = vunpack.c.h.b16 %v883
        %v891 = vunpack.c.l.b16 %v884
        %v892 = vunpack.c.h.b16 %v884
        %v893 = vunpack.c.l.b16 %v885
        %v894 = vunpack.c.h.b16 %v885
        %v895 = vpack.c.b16 %v889, %v889
        %v896 = vpack.c.b16 %v890, %v890
        %v897 = vpack.c.b16 %v891, %v891
        %v898 = vpack.c.b16 %v892, %v892
        %v899 = vpack.c.b16 %v893, %v893
        %v900 = vpack.c.b16 %v894, %v894
        %907 = vst [vmem:[%s334] sm:$0xf] %v895
        %908 = vst [vmem:[%s334 + $0x4] sm:$0xf] %v896
        %909 = vst [vmem:[%s334 + $0x8] sm:$0xf] %v897
        %910 = vst [vmem:[%s334 + $0xc] sm:$0xf] %v898
        %911 = vst [vmem:[%s334 + $0x10] sm:$0xf] %v899
        %912 = vst [vmem:[%s334 + $0x14] sm:$0xf] %v900
        %s913 = sand.u32 %s222, 1
        %s914 = sand.u32 %s222, 1
        %s915 = smul.addr %s914, 24
        %s916 = scalar_lea.vmem [#allocation2], %s915
        // Predicated region
        $region57: #{ae_encoder_forward.1} parent=55 // pred_check
          %p917 = pneg %p232
        $region58: #{ae_encoder_forward.1} parent=55 // pred_check_branch
          %919 = sbr.rel (%p917) target = $region60
        $region59: #{ae_encoder_forward.1} parent=55 // pred_region
          %s920 = smul.u32 6, %s20
          %s921 = ssub.s32 38, %s920
          %p922 = scmp.lt.s32.totalorder %s921, 6
          %s923 = scalar_select %p922, %s921, 6
          %s924 = smul.u32 64, %s923
          %p925 = scmp.ne.s32.totalorder 0, %s924
          %s926 = smul.addr %s920, 4
          %s927 = scalar_lea.vmem %s9, %s926
          // Predicated region
          $region61: #{ae_encoder_forward.1} parent=59 // pred_check
            %p928 = pneg %p925
          $region62: #{ae_encoder_forward.1} parent=59 // pred_check_branch
            %930 = sbr.rel (%p928) target = $region64
          $region63: #{ae_encoder_forward.1} parent=59 // pred_region
            // Predicated region
            $region65: #{ae_encoder_forward.1} parent=63 // pred_check
              _
            $region66: #{ae_encoder_forward.1} parent=63 // pred_check_branch
              %932 = sbr.rel target = $region68
            $region67: #{ae_encoder_forward.1} parent=63 // pred_region
              // Predicated region
              $region87: #{ae_encoder_forward.1} parent=67 // pred_check
                _
              $region88: #{ae_encoder_forward.1} parent=67 // pred_check_branch
                %993 = sbr.rel (0) target = $region90
              $region89: #{ae_encoder_forward.1} parent=67 // pred_region
                %s995 = ssub.s32 16, 1
                %s996 = sdiv.u32.pop %s923, 6
                %s997 = srem.u32.pop %s923, 6
                // While loop
                $region91: #{ae_encoder_forward.1} parent=89 // loop_pre_header
                  _
                $region92: #{ae_encoder_forward.1} parent=89 // loop_header
                  %s999 = sphi 0, %s1001
                  %p1000 = scmp.ge.s32.totalorder %s999, %s996
                  %s1004 = sphi 0, %s1021
                  %s1005 = sphi %s916, %s1024
                  %s1006 = sphi %s927, %s1025
                $region93: #{ae_encoder_forward.1} parent=89 // loop_header_branch
                  %1003 = sbr.rel (%p1000) target = $region97
                $region94: #{ae_encoder_forward.1} parent=89 // loop_body
                  %v1007 = vld [vmem:[%s1005] sm:%s995]
                  %1008 = vst [vmem:[%s1006] sm:%s995] %v1007
                  %v1009 = vld [vmem:[%s1005 + $0x4] sm:%s995]
                  %1010 = vst [vmem:[%s1006 + $0x4] sm:%s995] %v1009
                  %v1011 = vld [vmem:[%s1005 + $0x8] sm:%s995]
                  %1012 = vst [vmem:[%s1006 + $0x8] sm:%s995] %v1011
                  %v1013 = vld [vmem:[%s1005 + $0xc] sm:%s995]
                  %1014 = vst [vmem:[%s1006 + $0xc] sm:%s995] %v1013
                  %v1015 = vld [vmem:[%s1005 + $0x10] sm:%s995]
                  %1016 = vst [vmem:[%s1006 + $0x10] sm:%s995] %v1015
                  %v1017 = vld [vmem:[%s1005 + $0x14] sm:%s995]
                  %1018 = vst [vmem:[%s1006 + $0x14] sm:%s995] %v1017
                  %s1019 = sadd.s32 1, %s1004
                  %p1020 = scmp.ge.s32.totalorder %s1019, %s996
                  %s1021 = scalar_select %p1020, 0, %s1019
                  %s1022 = smul.u32 %s1021, 24
                  %s1023 = smul.u32 %s1021, 24
                  %s1024 = scalar_lea.vmem %s916, %s1022 [#allocation2]
                  %s1025 = scalar_lea.vmem %s927, %s1023
                $region95: #{ae_encoder_forward.1} parent=89 // loop_footer
                  %s1001 = sadd.s32 %s999, 1
                $region96: #{ae_encoder_forward.1} parent=89 // loop_footer_branch
                  %998 = sbr.rel target = $region92
                $region97: #{ae_encoder_forward.1} parent=89 // loop_exit
                  _
                %s1026 = sdiv.u32.pop %s923, 6
                %s1027 = srem.u32.pop %s923, 6
                %s1028 = smul.u32 %s1026, 6
                %s1029 = smul.u32 4, %s1028
                %s1030 = scalar_lea.vmem %s916, %s1029 [#allocation2]
                %s1031 = smul.u32 4, %s1028
                %s1032 = scalar_lea.vmem %s927, %s1031
                // While loop
                $region98: #{ae_encoder_forward.1} parent=89 // loop_pre_header
                  _
                $region99: #{ae_encoder_forward.1} parent=89 // loop_header
                  %s1034 = sphi 0, %s1036
                  %p1035 = scmp.ge.s32.totalorder %s1034, %s1027
                  %s1039 = sphi 0, %s1046
                  %s1040 = sphi %s1030, %s1049
                  %s1041 = sphi %s1032, %s1050
                $region100: #{ae_encoder_forward.1} parent=89 // loop_header_branch
                  %1038 = sbr.rel (%p1035) target = $region104
                $region101: #{ae_encoder_forward.1} parent=89 // loop_body
                  %v1042 = vld [vmem:[%s1040] sm:%s995]
                  %1043 = vst [vmem:[%s1041] sm:%s995] %v1042
                  %s1044 = sadd.s32 1, %s1039
                  %p1045 = scmp.ge.s32.totalorder %s1044, %s1027
                  %s1046 = scalar_select %p1045, 0, %s1044
                  %s1047 = smul.u32 %s1046, 4
                  %s1048 = smul.u32 %s1046, 4
                  %s1049 = scalar_lea.vmem %s1030, %s1047 [#allocation2]
                  %s1050 = scalar_lea.vmem %s1032, %s1048
                $region102: #{ae_encoder_forward.1} parent=89 // loop_footer
                  %s1036 = sadd.s32 %s1034, 1
                $region103: #{ae_encoder_forward.1} parent=89 // loop_footer_branch
                  %1033 = sbr.rel target = $region99
                $region104: #{ae_encoder_forward.1} parent=89 // loop_exit
                  _
              $region90: #{ae_encoder_forward.1} parent=67 // pred_fallthru
                _
            $region68: #{ae_encoder_forward.1} parent=63 // pred_fallthru
              _
            // Predicated region
            $region69: #{ae_encoder_forward.1} parent=63 // pred_check
              _
            $region70: #{ae_encoder_forward.1} parent=63 // pred_check_branch
              %934 = sbr.rel (0) target = $region72
            $region71: #{ae_encoder_forward.1} parent=63 // pred_region
              %s936 = ssub.s32 16, 1
              %s937 = sdiv.u32.pop %s923, 6
              %s938 = srem.u32.pop %s923, 6
              // While loop
              $region73: #{ae_encoder_forward.1} parent=71 // loop_pre_header
                _
              $region74: #{ae_encoder_forward.1} parent=71 // loop_header
                %s940 = sphi 0, %s942
                %p941 = scmp.ge.s32.totalorder %s940, %s937
                %s945 = sphi 0, %s962
                %s946 = sphi %s916, %s965
                %s947 = sphi %s927, %s966
              $region75: #{ae_encoder_forward.1} parent=71 // loop_header_branch
                %944 = sbr.rel (%p941) target = $region79
              $region76: #{ae_encoder_forward.1} parent=71 // loop_body
                %v948 = vld [vmem:[%s946] sm:%s936]
                %949 = vst [vmem:[%s947] sm:%s936] %v948
                %v950 = vld [vmem:[%s946 + $0x4] sm:%s936]
                %951 = vst [vmem:[%s947 + $0x4] sm:%s936] %v950
                %v952 = vld [vmem:[%s946 + $0x8] sm:%s936]
                %953 = vst [vmem:[%s947 + $0x8] sm:%s936] %v952
                %v954 = vld [vmem:[%s946 + $0xc] sm:%s936]
                %955 = vst [vmem:[%s947 + $0xc] sm:%s936] %v954
                %v956 = vld [vmem:[%s946 + $0x10] sm:%s936]
                %957 = vst [vmem:[%s947 + $0x10] sm:%s936] %v956
                %v958 = vld [vmem:[%s946 + $0x14] sm:%s936]
                %959 = vst [vmem:[%s947 + $0x14] sm:%s936] %v958
                %s960 = sadd.s32 1, %s945
                %p961 = scmp.ge.s32.totalorder %s960, %s937
                %s962 = scalar_select %p961, 0, %s960
                %s963 = smul.u32 %s962, 24
                %s964 = smul.u32 %s962, 24
                %s965 = scalar_lea.vmem %s916, %s963 [#allocation2]
                %s966 = scalar_lea.vmem %s927, %s964
              $region77: #{ae_encoder_forward.1} parent=71 // loop_footer
                %s942 = sadd.s32 %s940, 1
              $region78: #{ae_encoder_forward.1} parent=71 // loop_footer_branch
                %939 = sbr.rel target = $region74
              $region79: #{ae_encoder_forward.1} parent=71 // loop_exit
                _
              %s967 = sdiv.u32.pop %s923, 6
              %s968 = srem.u32.pop %s923, 6
              %s969 = smul.u32 %s967, 6
              %s970 = smul.u32 4, %s969
              %s971 = scalar_lea.vmem %s916, %s970 [#allocation2]
              %s972 = smul.u32 4, %s969
              %s973 = scalar_lea.vmem %s927, %s972
              // While loop
              $region80: #{ae_encoder_forward.1} parent=71 // loop_pre_header
                _
              $region81: #{ae_encoder_forward.1} parent=71 // loop_header
                %s975 = sphi 0, %s977
                %p976 = scmp.ge.s32.totalorder %s975, %s968
                %s980 = sphi 0, %s987
                %s981 = sphi %s971, %s990
                %s982 = sphi %s973, %s991
              $region82: #{ae_encoder_forward.1} parent=71 // loop_header_branch
                %979 = sbr.rel (%p976) target = $region86
              $region83: #{ae_encoder_forward.1} parent=71 // loop_body
                %v983 = vld [vmem:[%s981] sm:%s936]
                %984 = vst [vmem:[%s982] sm:%s936] %v983
                %s985 = sadd.s32 1, %s980
                %p986 = scmp.ge.s32.totalorder %s985, %s968
                %s987 = scalar_select %p986, 0, %s985
                %s988 = smul.u32 %s987, 4
                %s989 = smul.u32 %s987, 4
                %s990 = scalar_lea.vmem %s971, %s988 [#allocation2]
                %s991 = scalar_lea.vmem %s973, %s989
              $region84: #{ae_encoder_forward.1} parent=71 // loop_footer
                %s977 = sadd.s32 %s975, 1
              $region85: #{ae_encoder_forward.1} parent=71 // loop_footer_branch
                %974 = sbr.rel target = $region81
              $region86: #{ae_encoder_forward.1} parent=71 // loop_exit
                _
            $region72: #{ae_encoder_forward.1} parent=63 // pred_fallthru
              _
          $region64: #{ae_encoder_forward.1} parent=59 // pred_fallthru
            _
          %1051 = vnop
        $region60: #{ae_encoder_forward.1} parent=55 // pred_fallthru
          _
      $region56: #{ae_encoder_forward.1} parent=5 // pred_fallthru
        _
      %p1052 = scmp.le.s32.totalorder 2, %s15
      // Predicated region
      $region105: #{ae_encoder_forward.1} parent=5 // pred_check
        %p1053 = pneg %p1052
      $region106: #{ae_encoder_forward.1} parent=5 // pred_check_branch
        %1055 = sbr.rel (%p1053) target = $region108
      $region107: #{ae_encoder_forward.1} parent=5 // pred_region
        %s1056 = ssub.s32 %s15, 2
        // Predicated region
        $region109: #{ae_encoder_forward.1} parent=107 // pred_check
          %p1057 = pneg %p238
        $region110: #{ae_encoder_forward.1} parent=107 // pred_check_branch
          %1059 = sbr.rel (%p1057) target = $region112
        $region111: #{ae_encoder_forward.1} parent=107 // pred_region
          %s1060 = sand.u32 %s223, 1
          %s1061 = sand.u32 %s223, 1
          %s1062 = smul.addr %s1061, 24
          %s1063 = scalar_lea.vmem [#allocation2], %s1062
        $region112: #{ae_encoder_forward.1} parent=107 // pred_fallthru
          _
      $region108: #{ae_encoder_forward.1} parent=5 // pred_fallthru
        _
    $region6: #{ae_encoder_forward.1} parent=1 // loop_footer
      %s19 = sadd.s32 1, %s15
    $region7: #{ae_encoder_forward.1} parent=1 // loop_footer_branch
      %14 = sbr.rel target = $region3
    $region8: #{ae_encoder_forward.1} parent=1 // loop_exit
      _

</llo_original>
